<compile_context>
chip_gen: v6e
topology: v6e:2x2x1
jax: 0.10.0
libtpu: 0.0.40
codegen_flags: <defaults>
</compile_context>

<pallas_src>
import functools

import jax
import jax.numpy as jnp
from jax.experimental import pallas as pl
from jax.experimental.pallas import tpu as pltpu

_LANE = 128      # vreg lane width
_MAX_TB = 1024   # max batch tile (lanes) per grid step; tiny vs VMEM even on v7x


def _actor_kernel(x_ref, w1_ref, b1_ref, w2_ref, b2_ref, w3_ref, b3_ref, o_ref):
    """Fused forward pass on one (input_size, TB) batch tile."""
    x = x_ref[...]                                                    # (in, TB)

    # Layer 1: Linear + ReLU
    h1 = jnp.dot(w1_ref[...], x, preferred_element_type=jnp.float32) + b1_ref[...]
    h1 = jnp.maximum(h1, 0.0)                                         # (hid, TB)

    # Layer 2: Linear + ReLU
    h2 = jnp.dot(w2_ref[...], h1, preferred_element_type=jnp.float32) + b2_ref[...]
    h2 = jnp.maximum(h2, 0.0)                                         # (hid, TB)

    # Layer 3: Linear
    logits = jnp.dot(w3_ref[...], h2, preferred_element_type=jnp.float32) + b3_ref[...]

    # Softmax over the action (sublane) axis, numerically stable.
    m = jnp.max(logits, axis=0, keepdims=True)                        # (1, TB)
    e = jnp.exp(logits - m)
    denom = jnp.sum(e, axis=0, keepdims=True)                         # (1, TB)
    # Exact reciprocal keeps sum(probs) == 1 within 1e-5.
    o_ref[...] = (e * pl.reciprocal(denom, approx=False)).astype(o_ref.dtype)


def _round_up(n, m):
    return ((n + m - 1) // m) * m


@jax.jit
def actor_forward(x, w1, b1, w2, b2, w3, b3):
    """x: (batch, input_size) -> action probabilities (batch, num_actions)."""
    batch, input_size = x.shape
    hidden = w1.shape[0]
    num_actions = w3.shape[0]

    # Batch-on-lanes: put batch on the 128-lane axis, pad to a tile multiple.
    tb = min(_MAX_TB, _round_up(batch, _LANE))
    padded = _round_up(batch, tb)
    xt = jnp.pad(x.T.astype(jnp.float32), ((0, 0), (0, padded - batch)))   # (in, padded)

    out_t = pl.pallas_call(
        _actor_kernel,
        out_shape=jax.ShapeDtypeStruct((num_actions, padded), jnp.float32),
        grid_spec=pltpu.PrefetchScalarGridSpec(
            num_scalar_prefetch=0,
            grid=(padded // tb,),
            in_specs=[
                # Activations: one batch tile per grid step (auto double-buffered DMA).
                pl.BlockSpec((input_size, tb), lambda i: (0, i)),
                # Weights / biases: same block every step -> fetched once, VMEM-resident.
                pl.BlockSpec((hidden, input_size), lambda i: (0, 0)),
                pl.BlockSpec((hidden, 1), lambda i: (0, 0)),
                pl.BlockSpec((hidden, hidden), lambda i: (0, 0)),
                pl.BlockSpec((hidden, 1), lambda i: (0, 0)),
                pl.BlockSpec((num_actions, hidden), lambda i: (0, 0)),
                pl.BlockSpec((num_actions, 1), lambda i: (0, 0)),
            ],
            out_specs=pl.BlockSpec((num_actions, tb), lambda i: (0, i)),
        ),
        compiler_params=pltpu.CompilerParams(
            # Batch tiles are independent -> megacore sharding on v7x, no-op elsewhere.
            dimension_semantics=("parallel",),
        ),
    )(xt, w1, b1, w2, b2, w3, b3)

    return out_t[:, :batch].T                                          # (batch, num_actions)


def init_actor_params(key, input_size, hidden_size, num_actions):
    """PyTorch nn.Linear-style init: W ~ U[-1/sqrt(fan_in), 1/sqrt(fan_in)], W is (out, in)."""
    keys = jax.random.split(key, 6)

    def lin(kw, kb, fan_in, fan_out):
        bound = 1.0 / jnp.sqrt(jnp.float32(fan_in))
        w = jax.random.uniform(kw, (fan_out, fan_in), jnp.float32, -bound, bound)
        b = jax.random.uniform(kb, (fan_out, 1), jnp.float32, -bound, bound)
        return w, b

    w1, b1 = lin(keys[0], keys[1], input_size, hidden_size)
    w2, b2 = lin(keys[2], keys[3], hidden_size, hidden_size)
    w3, b3 = lin(keys[4], keys[5], hidden_size, num_actions)
    return w1, b1, w2, b2, w3, b3


if __name__ == "__main__":
    input_size = 16
    hidden_size = 32
    num_actions = 4
    batch = 8

    key = jax.random.PRNGKey(0)
    k_x, k_p = jax.random.split(key)
    x = jax.random.normal(k_x, (batch, input_size), jnp.float32)
    params = init_actor_params(k_p, input_size, hidden_size, num_actions)

    out = actor_forward(x, *params)
    out = jax.block_until_ready(out)

    # Reference in plain JAX (weights are (out, in), biases (out, 1)).
    w1, b1, w2, b2, w3, b3 = params
    h1 = jnp.maximum(x @ w1.T + b1[:, 0], 0.0)
    h2 = jnp.maximum(h1 @ w2.T + b2[:, 0], 0.0)
    ref = jax.nn.softmax(h2 @ w3.T + b3[:, 0], axis=-1)

    assert out.shape == (batch, num_actions)
    assert jnp.allclose(out, ref, atol=1e-5, rtol=1e-5)
    assert jnp.allclose(jnp.sum(out, axis=-1), 1.0, atol=1e-5)

    print("KERNEL_OK")
</pallas_src>

<mosaic_0001>
module attributes {stable_mosaic.version = 11 : i64} {
  func.func @_actor_kernel(%arg0: i32, %arg1: memref<16x128xf32, #tpu.memory_space<vmem>>, %arg2: memref<32x16xf32, #tpu.memory_space<vmem>>, %arg3: memref<32x1xf32, #tpu.memory_space<vmem>>, %arg4: memref<32x32xf32, #tpu.memory_space<vmem>>, %arg5: memref<32x1xf32, #tpu.memory_space<vmem>>, %arg6: memref<4x32xf32, #tpu.memory_space<vmem>>, %arg7: memref<4x1xf32, #tpu.memory_space<vmem>>, %arg8: memref<4x128xf32, #tpu.memory_space<vmem>>) attributes {dimension_semantics = [#tpu.dimension_semantics<parallel>], iteration_bounds = array<i64: 1>, scalar_prefetch = 0 : i64, scratch_operands = 0 : i64, tpu.core_type = #tpu.core_type<tc>, window_params = [{transform_indices = @transform_0, window_bounds = array<i64: 16, 128>}, {pipeline_mode = #tpu.pipeline_mode<synchronous>, transform_indices = @transform_1, window_bounds = array<i64: 32, 16>}, {pipeline_mode = #tpu.pipeline_mode<synchronous>, transform_indices = @transform_2, window_bounds = array<i64: 32, 1>}, {pipeline_mode = #tpu.pipeline_mode<synchronous>, transform_indices = @transform_3, window_bounds = array<i64: 32, 32>}, {pipeline_mode = #tpu.pipeline_mode<synchronous>, transform_indices = @transform_4, window_bounds = array<i64: 32, 1>}, {pipeline_mode = #tpu.pipeline_mode<synchronous>, transform_indices = @transform_5, window_bounds = array<i64: 4, 32>}, {pipeline_mode = #tpu.pipeline_mode<synchronous>, transform_indices = @transform_6, window_bounds = array<i64: 4, 1>}, {transform_indices = @transform_7, window_bounds = array<i64: 4, 128>}]} {
    %c0 = arith.constant 0 : index
    %c0_0 = arith.constant 0 : index
    %0 = vector.load %arg1[%c0, %c0_0] : memref<16x128xf32, #tpu.memory_space<vmem>>, vector<16x128xf32>
    %c0_1 = arith.constant 0 : index
    %c0_2 = arith.constant 0 : index
    %1 = vector.load %arg2[%c0_1, %c0_2] : memref<32x16xf32, #tpu.memory_space<vmem>>, vector<32x16xf32>
    %cst = arith.constant dense<0.000000e+00> : vector<32x128xf32>
    %2 = tpu.matmul %1, %0, %cst {dimension_numbers = #tpu.dot_dimension_numbers<[1], [0], [0], [1], [0, 0, 1, 1], [], []>} : vector<32x16xf32>, vector<16x128xf32>, vector<32x128xf32> -> vector<32x128xf32>
    %c0_3 = arith.constant 0 : index
    %c0_4 = arith.constant 0 : index
    %3 = vector.load %arg3[%c0_3, %c0_4] : memref<32x1xf32, #tpu.memory_space<vmem>>, vector<32x1xf32>
    %4 = vector.broadcast %3 : vector<32x1xf32> to vector<32x128xf32>
    %5 = arith.addf %2, %4 : vector<32x128xf32>
    %cst_5 = arith.constant 0.000000e+00 : f32
    %6 = vector.broadcast %cst_5 : f32 to vector<32x128xf32>
    %7 = arith.maximumf %5, %6 : vector<32x128xf32>
    %c0_6 = arith.constant 0 : index
    %c0_7 = arith.constant 0 : index
    %8 = vector.load %arg4[%c0_6, %c0_7] : memref<32x32xf32, #tpu.memory_space<vmem>>, vector<32x32xf32>
    %cst_8 = arith.constant dense<0.000000e+00> : vector<32x128xf32>
    %9 = tpu.matmul %8, %7, %cst_8 {dimension_numbers = #tpu.dot_dimension_numbers<[1], [0], [0], [1], [0, 0, 1, 1], [], []>} : vector<32x32xf32>, vector<32x128xf32>, vector<32x128xf32> -> vector<32x128xf32>
    %c0_9 = arith.constant 0 : index
    %c0_10 = arith.constant 0 : index
    %10 = vector.load %arg5[%c0_9, %c0_10] : memref<32x1xf32, #tpu.memory_space<vmem>>, vector<32x1xf32>
    %11 = vector.broadcast %10 : vector<32x1xf32> to vector<32x128xf32>
    %12 = arith.addf %9, %11 : vector<32x128xf32>
    %cst_11 = arith.constant 0.000000e+00 : f32
    %13 = vector.broadcast %cst_11 : f32 to vector<32x128xf32>
    %14 = arith.maximumf %12, %13 : vector<32x128xf32>
    %c0_12 = arith.constant 0 : index
    %c0_13 = arith.constant 0 : index
    %15 = vector.load %arg6[%c0_12, %c0_13] : memref<4x32xf32, #tpu.memory_space<vmem>>, vector<4x32xf32>
    %cst_14 = arith.constant dense<0.000000e+00> : vector<4x128xf32>
    %16 = tpu.matmul %15, %14, %cst_14 {dimension_numbers = #tpu.dot_dimension_numbers<[1], [0], [0], [1], [0, 0, 1, 1], [], []>} : vector<4x32xf32>, vector<32x128xf32>, vector<4x128xf32> -> vector<4x128xf32>
    %c0_15 = arith.constant 0 : index
    %c0_16 = arith.constant 0 : index
    %17 = vector.load %arg7[%c0_15, %c0_16] : memref<4x1xf32, #tpu.memory_space<vmem>>, vector<4x1xf32>
    %18 = vector.broadcast %17 : vector<4x1xf32> to vector<4x128xf32>
    %19 = arith.addf %16, %18 : vector<4x128xf32>
    %cst_17 = arith.constant dense<0xFF800000> : vector<128xf32>
    %20 = vector.multi_reduction <maximumf>, %19, %cst_17 [0] : vector<4x128xf32> to vector<128xf32>
    %21 = vector.shape_cast %20 : vector<128xf32> to vector<1x128xf32>
    %22 = vector.broadcast %21 : vector<1x128xf32> to vector<4x128xf32>
    %23 = arith.subf %19, %22 : vector<4x128xf32>
    %24 = math.exp %23 : vector<4x128xf32>
    %cst_18 = arith.constant dense<0.000000e+00> : vector<128xf32>
    %25 = vector.multi_reduction <add>, %24, %cst_18 [0] : vector<4x128xf32> to vector<128xf32>
    %26 = vector.shape_cast %25 : vector<128xf32> to vector<1x128xf32>
    %27 = tpu.reciprocal %26 : vector<1x128xf32> -> vector<1x128xf32>
    %28 = vector.broadcast %27 : vector<1x128xf32> to vector<4x128xf32>
    %29 = arith.mulf %24, %28 : vector<4x128xf32>
    %c0_19 = arith.constant 0 : index
    %c0_20 = arith.constant 0 : index
    %30 = vector.load %arg8[%c0_19, %c0_20] : memref<4x128xf32, #tpu.memory_space<vmem>>, vector<4x128xf32>
    tpu.vector_store %arg8[%c0_19, %c0_20], %29 {strides = array<i32>} : memref<4x128xf32, #tpu.memory_space<vmem>>, vector<4x128xf32>,
    return
  }
  func.func @transform_0(%arg0: i32) -> (i32, i32) {
    %c0_i32 = arith.constant 0 : i32
    %c0_i32_0 = arith.constant 0 : i32
    return %c0_i32, %arg0 : i32, i32
  }
  func.func @transform_1(%arg0: i32) -> (i32, i32) {
    %c0_i32 = arith.constant 0 : i32
    %c0_i32_0 = arith.constant 0 : i32
    %c0_i32_1 = arith.constant 0 : i32
    return %c0_i32, %c0_i32_0 : i32, i32
  }
  func.func @transform_2(%arg0: i32) -> (i32, i32) {
    %c0_i32 = arith.constant 0 : i32
    %c0_i32_0 = arith.constant 0 : i32
    %c0_i32_1 = arith.constant 0 : i32
    return %c0_i32, %c0_i32_0 : i32, i32
  }
  func.func @transform_3(%arg0: i32) -> (i32, i32) {
    %c0_i32 = arith.constant 0 : i32
    %c0_i32_0 = arith.constant 0 : i32
    %c0_i32_1 = arith.constant 0 : i32
    return %c0_i32, %c0_i32_0 : i32, i32
  }
  func.func @transform_4(%arg0: i32) -> (i32, i32) {
    %c0_i32 = arith.constant 0 : i32
    %c0_i32_0 = arith.constant 0 : i32
    %c0_i32_1 = arith.constant 0 : i32
    return %c0_i32, %c0_i32_0 : i32, i32
  }
  func.func @transform_5(%arg0: i32) -> (i32, i32) {
    %c0_i32 = arith.constant 0 : i32
    %c0_i32_0 = arith.constant 0 : i32
    %c0_i32_1 = arith.constant 0 : i32
    return %c0_i32, %c0_i32_0 : i32, i32
  }
  func.func @transform_6(%arg0: i32) -> (i32, i32) {
    %c0_i32 = arith.constant 0 : i32
    %c0_i32_0 = arith.constant 0 : i32
    %c0_i32_1 = arith.constant 0 : i32
    return %c0_i32, %c0_i32_0 : i32, i32
  }
  func.func @transform_7(%arg0: i32) -> (i32, i32) {
    %c0_i32 = arith.constant 0 : i32
    %c0_i32_0 = arith.constant 0 : i32
    return %c0_i32, %arg0 : i32, i32
  }
}

</mosaic_0001>

<llo_original>
// kernel: actor_forward.1
$region0: #{actor_forward.1}
  #allocation0 [shape = 'u32[]', space=smem, size = 0x4, offset = 0x4, fixed_abs, tag = 'smem constant byte address 0x4 - core index']
  #allocation1 [shape = 'u32[144,128]{1,0:T(1,128)}', space=vmem, size = 0x12000, scoped, tag = 'internal scratch']
  %s0 = inlined_call_operand.vmem [shape: f32[16,128], index: 0, kind: input, shape index: {}]
  %s1 = inlined_call_operand.vmem [shape: f32[32,16], index: 1, kind: input, shape index: {}]
  %s2 = inlined_call_operand.vmem [shape: f32[32,1], index: 2, kind: input, shape index: {}]
  %s3 = inlined_call_operand.vmem [shape: f32[32,32], index: 3, kind: input, shape index: {}]
  %s4 = inlined_call_operand.vmem [shape: f32[32,1], index: 4, kind: input, shape index: {}]
  %s5 = inlined_call_operand.vmem [shape: f32[4,32], index: 5, kind: input, shape index: {}]
  %s6 = inlined_call_operand.vmem [shape: f32[4,1], index: 6, kind: input, shape index: {}]
  %s7 = inlined_call_operand.vmem [shape: f32[4,128], index: 7, kind: output, shape index: {}]
  %s8 = sld [smem:[#allocation0]]
  $region38: #{actor_forward.1} parent=0
    _
  %s10 = ssub.s32 1, %s8
  %s11 = scalar_select 0, %s10, %s8
  // Predicated region
  $region2: #{actor_forward.1} parent=0 // pred_check
    _
  $region3: #{actor_forward.1} parent=0 // pred_check_branch
    %13 = sbr.rel (0) target = $region5
  $region4: #{actor_forward.1} parent=0 // pred_region
    _
  $region5: #{actor_forward.1} parent=0 // pred_fallthru
    _
  // Predicated region
  $region6: #{actor_forward.1} parent=0 // pred_check
    _
  $region7: #{actor_forward.1} parent=0 // pred_check_branch
    %15 = sbr.rel (0) target = $region9
  $region8: #{actor_forward.1} parent=0 // pred_region
    _
  $region9: #{actor_forward.1} parent=0 // pred_fallthru
    _
  // Predicated region
  $region10: #{actor_forward.1} parent=0 // pred_check
    _
  $region11: #{actor_forward.1} parent=0 // pred_check_branch
    %17 = sbr.rel (0) target = $region13
  $region12: #{actor_forward.1} parent=0 // pred_region
    _
  $region13: #{actor_forward.1} parent=0 // pred_fallthru
    _
  // Predicated region
  $region14: #{actor_forward.1} parent=0 // pred_check
    _
  $region15: #{actor_forward.1} parent=0 // pred_check_branch
    %19 = sbr.rel (0) target = $region17
  $region16: #{actor_forward.1} parent=0 // pred_region
    _
  $region17: #{actor_forward.1} parent=0 // pred_fallthru
    _
  // Predicated region
  $region18: #{actor_forward.1} parent=0 // pred_check
    _
  $region19: #{actor_forward.1} parent=0 // pred_check_branch
    %21 = sbr.rel (0) target = $region21
  $region20: #{actor_forward.1} parent=0 // pred_region
    _
  $region21: #{actor_forward.1} parent=0 // pred_fallthru
    _
  // Predicated region
  $region22: #{actor_forward.1} parent=0 // pred_check
    _
  $region23: #{actor_forward.1} parent=0 // pred_check_branch
    %23 = sbr.rel (0) target = $region25
  $region24: #{actor_forward.1} parent=0 // pred_region
    _
  $region25: #{actor_forward.1} parent=0 // pred_fallthru
    _
  // Predicated region
  $region26: #{actor_forward.1} parent=0 // pred_check
    _
  $region27: #{actor_forward.1} parent=0 // pred_check_branch
    %25 = sbr.rel (0) target = $region29
  $region28: #{actor_forward.1} parent=0 // pred_region
    _
  $region29: #{actor_forward.1} parent=0 // pred_fallthru
    _
  %v26 = vld [vmem:[%s0] sm:$0xff]
  %v27 = vld [vmem:[%s0 + $0x8] sm:$0xff]
  %v28 = vld [vmem:[%s1] sm:$0xff]
  %v29 = vld [vmem:[%s1 + $0x8] sm:$0xff]
  %v30 = vld [vmem:[%s1 + $0x10] sm:$0xff]
  %v31 = vld [vmem:[%s1 + $0x18] sm:$0xff]
  %v32 = vld [vmem:[%s2] sm:$0xff]
  %v33 = vld [vmem:[%s2 + $0x8] sm:$0xff]
  %v34 = vld [vmem:[%s2 + $0x10] sm:$0xff]
  %v35 = vld [vmem:[%s2 + $0x18] sm:$0xff]
  %37 = vset.pattern.permute.xlu0 0
  %38 = vperm.xlu0 %37, %v32
  %v39 = vpop.permute.xlu0 %38
  %42 = vset.pattern.permute.xlu0 0
  %43 = vperm.xlu0 %42, %v33
  %v44 = vpop.permute.xlu0 %43
  %47 = vset.pattern.permute.xlu0 0
  %48 = vperm.xlu0 %47, %v34
  %v49 = vpop.permute.xlu0 %48
  %52 = vset.pattern.permute.xlu0 0
  %53 = vperm.xlu0 %52, %v35
  %v54 = vpop.permute.xlu0 %53
  %vm56 = vcmask 130048
  %v58 = vsel %vm56, %v28, 0
  %v61 = vsel %vm56, %v29, 0
  %v64 = vsel %vm56, %v30, 0
  %v67 = vsel %vm56, %v31, 0
  %69 = vmatprep.subr.mxu0 0.0
  %70 = vmatpush1.msra.mxu0 0.0
  %71 = vmatprep.subr.mxu0 0.0
  %72 = vmatpush1.msra.mxu0 0.0
  %73 = vmatprep.subr.mxu0 0.0
  %74 = vmatpush1.msra.mxu0 0.0
  %75 = vmatprep.subr.mxu0 0.0
  %76 = vmatpush1.msra.mxu0 0.0
  %77 = vmatprep.subr.mxu0 0.0
  %78 = vmatpush1.msra.mxu0 0.0
  %79 = vmatprep.subr.mxu0 0.0
  %80 = vmatpush1.msra.mxu0 0.0
  %81 = vmatprep.subr.mxu0 0.0
  %82 = vmatpush1.msra.mxu0 0.0
  %83 = vmatprep.subr.mxu0 0.0
  %84 = vmatpush1.msra.mxu0 0.0
  %85 = vmatprep.subr.mxu0 0.0
  %86 = vmatpush1.msra.mxu0 0.0
  %87 = vmatprep.subr.mxu0 0.0
  %88 = vmatpush1.msra.mxu0 0.0
  %89 = vmatprep.subr.mxu0 0.0
  %90 = vmatpush1.msra.mxu0 0.0
  %91 = vmatprep.subr.mxu0 0.0
  %92 = vmatpush1.msra.mxu0 0.0
  %93 = vmatprep.subr.mxu0 0.0
  %94 = vmatpush1.msra.mxu0 0.0
  %95 = vmatprep.subr.mxu0 0.0
  %96 = vmatpush1.msra.mxu0 0.0
  %97 = vmatprep.subr.mxu0 0.0
  %98 = vmatpush1.msra.mxu0 %v27
  %99 = vmatprep.subr.mxu0 0.0
  %100 = vmatpush1.msra.mxu0 %v26
  %101 = vmatprep.subr.mxu0 0.0
  %102 = vmatpush2.msra.mxu0 0.0
  %103 = vmatprep.subr.mxu0 0.0
  %104 = vmatpush2.msra.mxu0 0.0
  %105 = vmatprep.subr.mxu0 0.0
  %106 = vmatpush2.msra.mxu0 0.0
  %107 = vmatprep.subr.mxu0 0.0
  %108 = vmatpush2.msra.mxu0 0.0
  %109 = vmatprep.subr.mxu0 0.0
  %110 = vmatpush2.msra.mxu0 0.0
  %111 = vmatprep.subr.mxu0 0.0
  %112 = vmatpush2.msra.mxu0 0.0
  %113 = vmatprep.subr.mxu0 0.0
  %114 = vmatpush2.msra.mxu0 0.0
  %115 = vmatprep.subr.mxu0 0.0
  %116 = vmatpush2.msra.mxu0 0.0
  %117 = vmatprep.subr.mxu0 0.0
  %118 = vmatpush2.msra.mxu0 0.0
  %119 = vmatprep.subr.mxu0 0.0
  %120 = vmatpush2.msra.mxu0 0.0
  %121 = vmatprep.subr.mxu0 0.0
  %122 = vmatpush2.msra.mxu0 0.0
  %123 = vmatprep.subr.mxu0 0.0
  %124 = vmatpush2.msra.mxu0 0.0
  %125 = vmatprep.subr.mxu0 0.0
  %126 = vmatpush2.msra.mxu0 0.0
  %127 = vmatprep.subr.mxu0 0.0
  %128 = vmatpush2.msra.mxu0 0.0
  %129 = vmatprep.subr.mxu0 0.0
  %130 = vmatpush2.msra.mxu0 0.0
  %131 = vmatprep.subr.mxu0 0.0
  %132 = vmatpush2.msra.mxu0 0.0
  %133 = vmatprep.mubr.f32.mxu0 0.0
  %134 = vmatmul.mubr.f32.gmra.mxu0 %v58
  %v135 = vpop.f32.mrf.mxu0
  %v136 = vadd.f32 %v39, %v135
  %v137 = vpop.f32.mrf.mxu0
  %138 = vmatprep.mubr.f32.mxu0 0.0
  %139 = vmatmul.mubr.f32.gmra.mxu0 %v61
  %v140 = vpop.f32.mrf.mxu0
  %v141 = vadd.f32 %v44, %v140
  %v142 = vpop.f32.mrf.mxu0
  %143 = vmatprep.mubr.f32.mxu0 0.0
  %144 = vmatmul.mubr.f32.gmra.mxu0 %v64
  %v145 = vpop.f32.mrf.mxu0
  %v146 = vadd.f32 %v49, %v145
  %v147 = vpop.f32.mrf.mxu0
  %148 = vmatprep.mubr.f32.mxu0 0.0
  %149 = vmatmul.mubr.f32.gmra.mxu0 %v67
  %v150 = vpop.f32.mrf.mxu0
  %v151 = vadd.f32 %v54, %v150
  %v152 = vpop.f32.mrf.mxu0
  %153 = vdwg.mxu0
  %v154 = vmax.f32 %v136, 0.0
  %v155 = vmax.f32 %v141, 0.0
  %v156 = vmax.f32 %v146, 0.0
  %v157 = vmax.f32 %v151, 0.0
  %v158 = vld [vmem:[%s3] sm:$0xff]
  %v159 = vld [vmem:[%s3 + $0x8] sm:$0xff]
  %v160 = vld [vmem:[%s3 + $0x10] sm:$0xff]
  %v161 = vld [vmem:[%s3 + $0x18] sm:$0xff]
  %v162 = vld [vmem:[%s4] sm:$0xff]
  %v163 = vld [vmem:[%s4 + $0x8] sm:$0xff]
  %v164 = vld [vmem:[%s4 + $0x10] sm:$0xff]
  %v165 = vld [vmem:[%s4 + $0x18] sm:$0xff]
  %167 = vset.pattern.permute.xlu0 0
  %168 = vperm.xlu0 %167, %v162
  %v169 = vpop.permute.xlu0 %168
  %172 = vset.pattern.permute.xlu0 0
  %173 = vperm.xlu0 %172, %v163
  %v174 = vpop.permute.xlu0 %173
  %177 = vset.pattern.permute.xlu0 0
  %178 = vperm.xlu0 %177, %v164
  %v179 = vpop.permute.xlu0 %178
  %182 = vset.pattern.permute.xlu0 0
  %183 = vperm.xlu0 %182, %v165
  %v184 = vpop.permute.xlu0 %183
  %vm186 = vcmask 261120
  %v188 = vsel %vm186, %v158, 0
  %v191 = vsel %vm186, %v159, 0
  %v194 = vsel %vm186, %v160, 0
  %v197 = vsel %vm186, %v161, 0
  %199 = vmatprep.subr.mxu0 0.0
  %200 = vmatpush1.msra.mxu0 0.0
  %201 = vmatprep.subr.mxu0 0.0
  %202 = vmatpush1.msra.mxu0 0.0
  %203 = vmatprep.subr.mxu0 0.0
  %204 = vmatpush1.msra.mxu0 0.0
  %205 = vmatprep.subr.mxu0 0.0
  %206 = vmatpush1.msra.mxu0 0.0
  %207 = vmatprep.subr.mxu0 0.0
  %208 = vmatpush1.msra.mxu0 0.0
  %209 = vmatprep.subr.mxu0 0.0
  %210 = vmatpush1.msra.mxu0 0.0
  %211 = vmatprep.subr.mxu0 0.0
  %212 = vmatpush1.msra.mxu0 0.0
  %213 = vmatprep.subr.mxu0 0.0
  %214 = vmatpush1.msra.mxu0 0.0
  %215 = vmatprep.subr.mxu0 0.0
  %216 = vmatpush1.msra.mxu0 0.0
  %217 = vmatprep.subr.mxu0 0.0
  %218 = vmatpush1.msra.mxu0 0.0
  %219 = vmatprep.subr.mxu0 0.0
  %220 = vmatpush1.msra.mxu0 0.0
  %221 = vmatprep.subr.mxu0 0.0
  %222 = vmatpush1.msra.mxu0 0.0
  %223 = vmatprep.subr.mxu0 0.0
  %224 = vmatpush1.msra.mxu0 %v157
  %225 = vmatprep.subr.mxu0 0.0
  %226 = vmatpush1.msra.mxu0 %v156
  %227 = vmatprep.subr.mxu0 0.0
  %228 = vmatpush1.msra.mxu0 %v155
  %229 = vmatprep.subr.mxu0 0.0
  %230 = vmatpush1.msra.mxu0 %v154
  %231 = vmatprep.subr.mxu0 0.0
  %232 = vmatpush2.msra.mxu0 0.0
  %233 = vmatprep.subr.mxu0 0.0
  %234 = vmatpush2.msra.mxu0 0.0
  %235 = vmatprep.subr.mxu0 0.0
  %236 = vmatpush2.msra.mxu0 0.0
  %237 = vmatprep.subr.mxu0 0.0
  %238 = vmatpush2.msra.mxu0 0.0
  %239 = vmatprep.subr.mxu0 0.0
  %240 = vmatpush2.msra.mxu0 0.0
  %241 = vmatprep.subr.mxu0 0.0
  %242 = vmatpush2.msra.mxu0 0.0
  %243 = vmatprep.subr.mxu0 0.0
  %244 = vmatpush2.msra.mxu0 0.0
  %245 = vmatprep.subr.mxu0 0.0
  %246 = vmatpush2.msra.mxu0 0.0
  %247 = vmatprep.subr.mxu0 0.0
  %248 = vmatpush2.msra.mxu0 0.0
  %249 = vmatprep.subr.mxu0 0.0
  %250 = vmatpush2.msra.mxu0 0.0
  %251 = vmatprep.subr.mxu0 0.0
  %252 = vmatpush2.msra.mxu0 0.0
  %253 = vmatprep.subr.mxu0 0.0
  %254 = vmatpush2.msra.mxu0 0.0
  %255 = vmatprep.subr.mxu0 0.0
  %256 = vmatpush2.msra.mxu0 0.0
  %257 = vmatprep.subr.mxu0 0.0
  %258 = vmatpush2.msra.mxu0 0.0
  %259 = vmatprep.subr.mxu0 0.0
  %260 = vmatpush2.msra.mxu0 0.0
  %261 = vmatprep.subr.mxu0 0.0
  %262 = vmatpush2.msra.mxu0 0.0
  %263 = vmatprep.mubr.f32.mxu0 0.0
  %264 = vmatmul.mubr.f32.gmra.mxu0 %v188
  %v265 = vpop.f32.mrf.mxu0
  %v266 = vadd.f32 %v169, %v265
  %v267 = vpop.f32.mrf.mxu0
  %268 = vmatprep.mubr.f32.mxu0 0.0
  %269 = vmatmul.mubr.f32.gmra.mxu0 %v191
  %v270 = vpop.f32.mrf.mxu0
  %v271 = vadd.f32 %v174, %v270
  %v272 = vpop.f32.mrf.mxu0
  %273 = vmatprep.mubr.f32.mxu0 0.0
  %274 = vmatmul.mubr.f32.gmra.mxu0 %v194
  %v275 = vpop.f32.mrf.mxu0
  %v276 = vadd.f32 %v179, %v275
  %v277 = vpop.f32.mrf.mxu0
  %278 = vmatprep.mubr.f32.mxu0 0.0
  %279 = vmatmul.mubr.f32.gmra.mxu0 %v197
  %v280 = vpop.f32.mrf.mxu0
  %v281 = vadd.f32 %v184, %v280
  %v282 = vpop.f32.mrf.mxu0
  %283 = vdwg.mxu0
  %v284 = vmax.f32 %v266, 0.0
  %v285 = vmax.f32 %v271, 0.0
  %v286 = vmax.f32 %v276, 0.0
  %v287 = vmax.f32 %v281, 0.0
  %v288 = vld [vmem:[%s5] sm:$0xf]
  %v289 = vld [vmem:[%s6] sm:$0xf]
  %291 = vset.pattern.permute.xlu0 0
  %292 = vperm.xlu0 %291, %v289
  %v293 = vpop.permute.xlu0 %292
  %v296 = vsel %vm186, %v288, 0
  %298 = vmatprep.subr.mxu0 0.0
  %299 = vmatpush1.msra.mxu0 0.0
  %300 = vmatprep.subr.mxu0 0.0
  %301 = vmatpush1.msra.mxu0 0.0
  %302 = vmatprep.subr.mxu0 0.0
  %303 = vmatpush1.msra.mxu0 0.0
  %304 = vmatprep.subr.mxu0 0.0
  %305 = vmatpush1.msra.mxu0 0.0
  %306 = vmatprep.subr.mxu0 0.0
  %307 = vmatpush1.msra.mxu0 0.0
  %308 = vmatprep.subr.mxu0 0.0
  %309 = vmatpush1.msra.mxu0 0.0
  %310 = vmatprep.subr.mxu0 0.0
  %311 = vmatpush1.msra.mxu0 0.0
  %312 = vmatprep.subr.mxu0 0.0
  %313 = vmatpush1.msra.mxu0 0.0
  %314 = vmatprep.subr.mxu0 0.0
  %315 = vmatpush1.msra.mxu0 0.0
  %316 = vmatprep.subr.mxu0 0.0
  %317 = vmatpush1.msra.mxu0 0.0
  %318 = vmatprep.subr.mxu0 0.0
  %319 = vmatpush1.msra.mxu0 0.0
  %320 = vmatprep.subr.mxu0 0.0
  %321 = vmatpush1.msra.mxu0 0.0
  %322 = vmatprep.subr.mxu0 0.0
  %323 = vmatpush1.msra.mxu0 %v287
  %324 = vmatprep.subr.mxu0 0.0
  %325 = vmatpush1.msra.mxu0 %v286
  %326 = vmatprep.subr.mxu0 0.0
  %327 = vmatpush1.msra.mxu0 %v285
  %328 = vmatprep.subr.mxu0 0.0
  %329 = vmatpush1.msra.mxu0 %v284
  %330 = vmatprep.subr.mxu0 0.0
  %331 = vmatpush2.msra.mxu0 0.0
  %332 = vmatprep.subr.mxu0 0.0
  %333 = vmatpush2.msra.mxu0 0.0
  %334 = vmatprep.subr.mxu0 0.0
  %335 = vmatpush2.msra.mxu0 0.0
  %336 = vmatprep.subr.mxu0 0.0
  %337 = vmatpush2.msra.mxu0 0.0
  %338 = vmatprep.subr.mxu0 0.0
  %339 = vmatpush2.msra.mxu0 0.0
  %340 = vmatprep.subr.mxu0 0.0
  %341 = vmatpush2.msra.mxu0 0.0
  %342 = vmatprep.subr.mxu0 0.0
  %343 = vmatpush2.msra.mxu0 0.0
  %344 = vmatprep.subr.mxu0 0.0
  %345 = vmatpush2.msra.mxu0 0.0
  %346 = vmatprep.subr.mxu0 0.0
  %347 = vmatpush2.msra.mxu0 0.0
  %348 = vmatprep.subr.mxu0 0.0
  %349 = vmatpush2.msra.mxu0 0.0
  %350 = vmatprep.subr.mxu0 0.0
  %351 = vmatpush2.msra.mxu0 0.0
  %352 = vmatprep.subr.mxu0 0.0
  %353 = vmatpush2.msra.mxu0 0.0
  %354 = vmatprep.subr.mxu0 0.0
  %355 = vmatpush2.msra.mxu0 0.0
  %356 = vmatprep.subr.mxu0 0.0
  %357 = vmatpush2.msra.mxu0 0.0
  %358 = vmatprep.subr.mxu0 0.0
  %359 = vmatpush2.msra.mxu0 0.0
  %360 = vmatprep.subr.mxu0 0.0
  %361 = vmatpush2.msra.mxu0 0.0
  %362 = vmatprep.mubr.f32.mxu0 0.0
  %363 = vmatmul.mubr.f32.gmra.mxu0 %v296
  %v364 = vpop.f32.mrf.mxu0
  %v365 = vadd.f32 %v293, %v364
  %v366 = vpop.f32.mrf.mxu0
  %367 = vdwg.mxu0
  %vm368 = vcmask 1043456
  %v369 = vsel %vm368, %v365, -inf
  %v370 = vrot.slane %v369, 4
  %v371 = vmax.f32 %v369, %v370
  %v372 = vrot.slane %v371, 2
  %v373 = vmax.f32 %v371, %v372
  %v374 = vrot.slane %v373, 1
  %v375 = vmax.f32 %v373, %v374
  %v376 = vsub.f32 %v365, %v375
  %v377 = vmul.f32 %v376, 1.442695
  %v378 = vpow.pop %v377
  %v379 = vsel %vm368, %v378, 0.0
  %v380 = vrot.slane %v379, 4
  %v381 = vadd.f32 %v379, %v380
  %v382 = vrot.slane %v381, 2
  %v383 = vadd.f32 %v381, %v382
  %v384 = vrot.slane %v383, 1
  %v385 = vadd.f32 %v383, %v384
  %v386 = vrcp.pop %v385
  %v387 = vmul.f32 %v378, %v386
  %388 = vst [vmem:[%s7] sm:$0xf] %v387
  // Predicated region
  $region30: #{actor_forward.1} parent=0 // pred_check
    _
  $region31: #{actor_forward.1} parent=0 // pred_check_branch
    %390 = sbr.rel (0) target = $region33
  $region32: #{actor_forward.1} parent=0 // pred_region
    _
  $region33: #{actor_forward.1} parent=0 // pred_fallthru
    _
  // Predicated region
  $region34: #{actor_forward.1} parent=0 // pred_check
    _
  $region35: #{actor_forward.1} parent=0 // pred_check_branch
    %392 = sbr.rel (0) target = $region37
  $region36: #{actor_forward.1} parent=0 // pred_region
    _
  $region37: #{actor_forward.1} parent=0 // pred_fallthru
    _

</llo_original>
